<compile_context>
chip_gen: v5e
topology: v5e:2x2
jax: 0.10.0
libtpu: 0.0.40
codegen_flags: <defaults>
</compile_context>

<pallas_src>
import functools

import jax
import jax.numpy as jnp
from jax.experimental import pallas as pl
from jax.experimental.pallas import tpu as pltpu

_VMEM_LIMIT_BYTES = 32 * 1024 * 1024   # explicit scoped-VMEM limit (safe on v5e/v6e/v7x)
_VMEM_BUDGET_BYTES = 20 * 1024 * 1024  # target real footprint per pipeline stage


def _cdiv(a, b):
    return (a + b - 1) // b


def _round_up(v, m):
    return _cdiv(v, m) * m


def _nodenorm_kernel(*refs, nn_type, eps, unbiased, power, d, packed):
    """One tile of rows, full feature width.  f32 in-register compute."""
    if packed:
        s_ref, x_ref, o_ref = refs          # s_ref: (128,128) block-diag 0/1 matrix
    else:
        x_ref, o_ref = refs

    x = x_ref[...].astype(jnp.float32)
    need_var = nn_type in ('n', 'v', 'srv', 'pr')
    need_mean = nn_type in ('n', 'v', 'srv', 'pr', 'm')

    ex2 = None
    mean = None
    if need_mean:
        if packed:
            # Segmented reduce + broadcast in one MXU op: (tile,128) @ (128,128)
            # block-diagonal matrix sums each D-lane segment and replicates the
            # sum across its lanes.  Keeps all vregs lane-dense (no relayout).
            s = s_ref[...]
            mean = jnp.dot(x, s, preferred_element_type=jnp.float32) * (1.0 / d)
            if need_var:
                ex2 = jnp.dot(x * x, s, preferred_element_type=jnp.float32) * (1.0 / d)
        else:
            # Two independent cross-lane reductions (fused single pass over x).
            mean = jnp.mean(x, axis=-1, keepdims=True)
            if need_var:
                ex2 = jnp.mean(x * x, axis=-1, keepdims=True)

    if need_var:
        # Clamp: E[x^2] - mean^2 can go slightly negative from f32 cancellation.
        var = jnp.maximum(ex2 - mean * mean, 0.0)
        if unbiased and d > 1:               # guard d==1 (would divide by zero)
            var = var * (d / (d - 1.0))

    if nn_type == 'n':
        out = (x - mean) * jax.lax.rsqrt(var + eps)
    elif nn_type == 'v':
        out = x * jax.lax.rsqrt(var + eps)
    elif nn_type == 'm':
        out = x - mean
    elif nn_type == 'srv':
        std = jnp.sqrt(var + eps)
        out = x * jax.lax.rsqrt(std)         # x / sqrt(std)
    elif nn_type == 'pr':
        std = jnp.sqrt(var + eps)
        out = x * jnp.exp(jnp.log(std) * (-power))   # x / std**power
    else:
        out = x                              # PyTorch fall-through: identity

    o_ref[...] = out.astype(o_ref.dtype)


def _pick_row_tile(n_rows, row_width, dtype):
    """Largest row tile that (a) is a multiple of the dtype's sublane packing,
    (b) keeps the *real* per-stage footprint (double-buffered in+out plus ~4
    f32 full-tile temps) under the byte budget, and (c) splits the rounded row
    count evenly over >= 4 grid steps when the grid is multi-step (megacore
    balance on v7x + pipeline ramp everywhere)."""
    itemsize = jnp.dtype(dtype).itemsize
    packing = max(1, 4 // itemsize) * 8                 # 8 f32, 16 bf16, 32 int8
    per_row_bytes = row_width * (4 * itemsize + 4 * 4)  # 2x in + 2x out + ~4 f32 temps
    tile = (_VMEM_BUDGET_BYTES // max(per_row_bytes, 1)) // packing * packing
    tile = max(tile, packing)

    n_rounded = _round_up(n_rows, packing)
    tile = min(tile, n_rounded)

    steps = _cdiv(n_rounded, tile)
    if steps > 1:
        steps = max(steps, 4)
        tile = min(tile, _round_up(_cdiv(n_rounded, steps), packing))
    return max(tile, packing)


def node_norm(x, *, nn_type='n', unbiased=False, eps=1e-05, power_root=2,
              row_tile=None):
    """Pallas NodeNorm over a [N, D] node-feature matrix."""
    n, d = x.shape
    power = 1.0 / power_root

    # Lane-dense packing for narrow D (see header).
    packed = (d < 128) and (128 % d == 0) and ((n * d) % 128 == 0)
    if packed:
        rows, width = (n * d) // 128, 128
        x_in = x.reshape(rows, width)                    # free row-major reshape
        seg = jnp.arange(128, dtype=jnp.int32) // d
        seg_mat = (seg[:, None] == seg[None, :]).astype(jnp.float32)
    else:
        rows, width = n, d
        x_in = x

    tile = row_tile if row_tile is not None else _pick_row_tile(rows, width, x.dtype)

    kernel = functools.partial(
        _nodenorm_kernel, nn_type=nn_type, eps=eps, unbiased=unbiased,
        power=power, d=d, packed=packed,
    )

    in_specs = [pl.BlockSpec((tile, width), lambda i: (i, 0))]
    operands = (x_in,)
    if packed:
        # Constant block index -> the segment matrix is DMA'd once and revisited.
        in_specs = [pl.BlockSpec((128, 128), lambda i: (0, 0))] + in_specs
        operands = (seg_mat, x_in)

    out = pl.pallas_call(
        kernel,
        out_shape=jax.ShapeDtypeStruct((rows, width), x.dtype),
        grid_spec=pltpu.PrefetchScalarGridSpec(
            num_scalar_prefetch=0,
            grid=(_cdiv(rows, tile),),                   # ragged rows handled by masking
            in_specs=in_specs,
            out_specs=pl.BlockSpec((tile, width), lambda i: (i, 0)),
        ),
        compiler_params=pltpu.CompilerParams(
            dimension_semantics=("parallel",),           # rows are independent
            vmem_limit_bytes=_VMEM_LIMIT_BYTES,
        ),
    )(*operands)

    return out.reshape(n, d) if packed else out


def _node_norm_ref(x, *, nn_type='n', unbiased=False, eps=1e-05, power_root=2):
    """Pure-JAX reference mirroring the PyTorch forward."""
    x32 = x.astype(jnp.float32)
    d = x32.shape[-1]
    mean = jnp.mean(x32, axis=1, keepdims=True)
    var = jnp.mean((x32 - mean) ** 2, axis=1, keepdims=True)
    if unbiased and d > 1:
        var = var * (d / (d - 1))
    std = jnp.sqrt(var + eps)
    power = 1.0 / power_root
    if nn_type == 'n':
        out = (x32 - mean) / std
    elif nn_type == 'v':
        out = x32 / std
    elif nn_type == 'm':
        out = x32 - mean
    elif nn_type == 'srv':
        out = x32 / jnp.sqrt(std)
    elif nn_type == 'pr':
        out = x32 / jnp.power(std, power)
    else:
        out = x32
    return out.astype(x.dtype)


if __name__ == "__main__":
    key = jax.random.PRNGKey(0)
    ok = True

    # f32: packed path (16x32 -> [4,128]), ragged fallback path (37x32),
    # and an already-lane-dense path (24x128).
    for (N, D) in ((16, 32), (37, 32), (24, 128)):
        x = jax.random.normal(jax.random.fold_in(key, N * 1000 + D), (N, D),
                              dtype=jnp.float32)
        for nn_type in ('n', 'v', 'm', 'srv', 'pr'):
            out = node_norm(x, nn_type=nn_type)
            jax.block_until_ready(out)
            ref = _node_norm_ref(x, nn_type=nn_type)
            if not jnp.allclose(out, ref, atol=1e-5, rtol=1e-5):
                ok = False
                print(f"MISMATCH nn_type={nn_type} shape=({N},{D})")

    # Unbiased variance variant.
    xu = jax.random.normal(jax.random.fold_in(key, 7), (16, 32), dtype=jnp.float32)
    outu = node_norm(xu, nn_type='n', unbiased=True)
    jax.block_until_ready(outu)
    refu = _node_norm_ref(xu, nn_type='n', unbiased=True)
    if not jnp.allclose(outu, refu, atol=1e-5, rtol=1e-5):
        ok = False
        print("MISMATCH unbiased nn_type=n")

    # bf16 I/O path (packed, row tile is a multiple of 16; compute in f32).
    xb = jax.random.normal(jax.random.fold_in(key, 999), (48, 32),
                           dtype=jnp.float32).astype(jnp.bfloat16)
    outb = node_norm(xb, nn_type='n')
    jax.block_until_ready(outb)
    refb = _node_norm_ref(xb, nn_type='n')
    if not jnp.allclose(outb.astype(jnp.float32), refb.astype(jnp.float32),
                        atol=2e-2, rtol=2e-2):
        ok = False
        print("MISMATCH bf16 nn_type=n")

    if ok:
        print("KERNEL_OK")
</pallas_src>

<mosaic_0001>
module attributes {stable_mosaic.version = 11 : i64} {
  func.func @_nodenorm_kernel(%arg0: i32, %arg1: memref<128x128xf32, #tpu.memory_space<vmem>>, %arg2: memref<8x128xf32, #tpu.memory_space<vmem>>, %arg3: memref<8x128xf32, #tpu.memory_space<vmem>>) attributes {dimension_semantics = [#tpu.dimension_semantics<parallel>], iteration_bounds = array<i64: 1>, scalar_prefetch = 0 : i64, scratch_operands = 0 : i64, tpu.core_type = #tpu.core_type<tc>, window_params = [{pipeline_mode = #tpu.pipeline_mode<synchronous>, transform_indices = @transform_0, window_bounds = array<i64: 128, 128>}, {transform_indices = @transform_1, window_bounds = array<i64: 8, 128>}, {transform_indices = @transform_2, window_bounds = array<i64: 8, 128>}]} {
    %c0 = arith.constant 0 : index
    %c0_0 = arith.constant 0 : index
    %0 = vector.load %arg2[%c0, %c0_0] : memref<8x128xf32, #tpu.memory_space<vmem>>, vector<8x128xf32>
    %c0_1 = arith.constant 0 : index
    %c0_2 = arith.constant 0 : index
    %1 = vector.load %arg1[%c0_1, %c0_2] : memref<128x128xf32, #tpu.memory_space<vmem>>, vector<128x128xf32>
    %cst = arith.constant dense<0.000000e+00> : vector<8x128xf32>
    %2 = tpu.matmul %0, %1, %cst {dimension_numbers = #tpu.dot_dimension_numbers<[1], [0], [0], [1], [0, 0, 1, 1], [], []>} : vector<8x128xf32>, vector<128x128xf32>, vector<8x128xf32> -> vector<8x128xf32>
    %cst_3 = arith.constant 3.125000e-02 : f32
    %3 = vector.broadcast %cst_3 : f32 to vector<8x128xf32>
    %4 = arith.mulf %2, %3 : vector<8x128xf32>
    %5 = arith.mulf %0, %0 : vector<8x128xf32>
    %cst_4 = arith.constant dense<0.000000e+00> : vector<8x128xf32>
    %6 = tpu.matmul %5, %1, %cst_4 {dimension_numbers = #tpu.dot_dimension_numbers<[1], [0], [0], [1], [0, 0, 1, 1], [], []>} : vector<8x128xf32>, vector<128x128xf32>, vector<8x128xf32> -> vector<8x128xf32>
    %cst_5 = arith.constant 3.125000e-02 : f32
    %7 = vector.broadcast %cst_5 : f32 to vector<8x128xf32>
    %8 = arith.mulf %6, %7 : vector<8x128xf32>
    %9 = arith.mulf %4, %4 : vector<8x128xf32>
    %10 = arith.subf %8, %9 : vector<8x128xf32>
    %cst_6 = arith.constant 0.000000e+00 : f32
    %11 = vector.broadcast %cst_6 : f32 to vector<8x128xf32>
    %12 = arith.maximumf %10, %11 : vector<8x128xf32>
    %13 = arith.subf %0, %4 : vector<8x128xf32>
    %cst_7 = arith.constant 9.99999974E-6 : f32
    %14 = vector.broadcast %cst_7 : f32 to vector<8x128xf32>
    %15 = arith.addf %12, %14 : vector<8x128xf32>
    %16 = math.rsqrt %15 : vector<8x128xf32>
    %17 = arith.mulf %13, %16 : vector<8x128xf32>
    %c0_8 = arith.constant 0 : index
    %c0_9 = arith.constant 0 : index
    %18 = vector.load %arg3[%c0_8, %c0_9] : memref<8x128xf32, #tpu.memory_space<vmem>>, vector<8x128xf32>
    tpu.vector_store %arg3[%c0_8, %c0_9], %17 {strides = array<i32>} : memref<8x128xf32, #tpu.memory_space<vmem>>, vector<8x128xf32>,
    return
  }
  func.func @transform_0(%arg0: i32) -> (i32, i32) {
    %c0_i32 = arith.constant 0 : i32
    %c0_i32_0 = arith.constant 0 : i32
    %c0_i32_1 = arith.constant 0 : i32
    return %c0_i32, %c0_i32_0 : i32, i32
  }
  func.func @transform_1(%arg0: i32) -> (i32, i32) {
    %c0_i32 = arith.constant 0 : i32
    %c0_i32_0 = arith.constant 0 : i32
    return %arg0, %c0_i32 : i32, i32
  }
  func.func @transform_2(%arg0: i32) -> (i32, i32) {
    %c0_i32 = arith.constant 0 : i32
    %c0_i32_0 = arith.constant 0 : i32
    return %arg0, %c0_i32 : i32, i32
  }
}

</mosaic_0001>

<llo_original>
// kernel: tpu_custom_call.1
$region0: #{tpu_custom_call.1}
  #allocation0 [shape = 'u32[]', space=smem, size = 0x4, offset = 0x4, fixed_abs, tag = 'smem constant byte address 0x4 - core index']
  #allocation1 [shape = 'u32[72,128]{1,0:T(1,128)}', space=vmem, size = 0x9000, scoped, tag = 'internal scratch']
  %s0 = inlined_call_operand.hbm [shape: f32[128,128], index: 0, kind: input, shape index: {}]
  %s1 = inlined_call_operand.hbm [shape: f32[4,128], index: 1, kind: input, shape index: {}]
  %s2 = inlined_call_operand.hbm [shape: f32[4,128], index: 2, kind: output, shape index: {}]
  %s3 = sld [smem:[#allocation0]]
  $region26: #{tpu_custom_call.1} parent=0
    _
  %s5 = ssub.s32 1, %s3
  %s6 = scalar_select 0, %s5, %s3
  $region1: #{tpu_custom_call.1} parent=0
    #allocation2 [shape = 'u8[65536]{0}', space=vmem, size = 0x10000, scoped, tag = 'input window, operand 0, single buffered']
    #allocation3 [shape = 's32[1]{0}', space=sflag, size = 0x4, scoped, tag = 'scoped memory for tpu_custom_call.1']
    #allocation4 [shape = 's32[1]{0}', space=sflag, size = 0x4, scoped, tag = 'scoped memory for tpu_custom_call.1']
    #allocation5 [shape = 'u8[4096]{0}', space=vmem, size = 0x1000, scoped, tag = 'input window, operand 1, single buffered']
    #allocation6 [shape = 's32[1]{0}', space=sflag, size = 0x4, scoped, tag = 'scoped memory for tpu_custom_call.1']
    #allocation7 [shape = 'u8[4096]{0}', space=vmem, size = 0x1000, scoped, tag = 'output window, operand 0, single buffered']
    %7 = vsyncpa [#allocation3], 0
    %8 = vsyncpa [#allocation6], 0
    %9 = vsyncpa [#allocation4], 0
    // Predicated region
    $region2: #{tpu_custom_call.1} parent=1 // pred_check
      _
    $region3: #{tpu_custom_call.1} parent=1 // pred_check_branch
      %11 = sbr.rel (0) target = $region5
    $region4: #{tpu_custom_call.1} parent=1 // pred_region
      %13 = vsyncadd [#allocation3], 0
      %s14 = sshll.u32 %s0, 4
      %s15 = int_to_ptr.hbm [resolvable:$true] %s14
      %s16 = sshll.u32 [#allocation2], 4
      %s17 = int_to_ptr.vmem [resolvable:$true] %s16
      %22 = dma.hbm_to_vmem [thread:$0]  %s15, 2048, %s17, [#allocation3], 128, 128, 8
    $region5: #{tpu_custom_call.1} parent=1 // pred_fallthru
      _
    // Predicated region
    $region6: #{tpu_custom_call.1} parent=1 // pred_check
      _
    $region7: #{tpu_custom_call.1} parent=1 // pred_check_branch
      %24 = sbr.rel (0) target = $region9
    $region8: #{tpu_custom_call.1} parent=1 // pred_region
      %26 = vsyncadd [#allocation6], 64
      %s27 = sshll.u32 %s1, 4
      %s28 = int_to_ptr.hbm [resolvable:$true] %s27
      %s29 = sshll.u32 [#allocation5], 4
      %s30 = int_to_ptr.vmem [resolvable:$true] %s29
      %35 = dma.hbm_to_vmem [thread:$0]  %s28, 64, %s30, [#allocation6], 64, 64, 4
    $region9: #{tpu_custom_call.1} parent=1 // pred_fallthru
      _
    // Predicated region
    $region10: #{tpu_custom_call.1} parent=1 // pred_check
      _
    $region11: #{tpu_custom_call.1} parent=1 // pred_check_branch
      %37 = sbr.rel (0) target = $region13
    $region12: #{tpu_custom_call.1} parent=1 // pred_region
      %39 = dma.done [#allocation3], 2048
    $region13: #{tpu_custom_call.1} parent=1 // pred_fallthru
      _
    // Predicated region
    $region14: #{tpu_custom_call.1} parent=1 // pred_check
      _
    $region15: #{tpu_custom_call.1} parent=1 // pred_check_branch
      %41 = sbr.rel (0) target = $region17
    $region16: #{tpu_custom_call.1} parent=1 // pred_region
      %43 = dma.done [#allocation6], 128
    $region17: #{tpu_custom_call.1} parent=1 // pred_fallthru
      _
    %v44 = vld [vmem:[#allocation5] sm:$0xff]
    %v45 = vld [vmem:[#allocation2] sm:$0xff]
    %v46 = vld [vmem:[#allocation2 + $0x8] sm:$0xff]
    %v47 = vld [vmem:[#allocation2 + $0x10] sm:$0xff]
    %v48 = vld [vmem:[#allocation2 + $0x18] sm:$0xff]
    %v49 = vld [vmem:[#allocation2 + $0x20] sm:$0xff]
    %v50 = vld [vmem:[#allocation2 + $0x28] sm:$0xff]
    %v51 = vld [vmem:[#allocation2 + $0x30] sm:$0xff]
    %v52 = vld [vmem:[#allocation2 + $0x38] sm:$0xff]
    %v53 = vld [vmem:[#allocation2 + $0x40] sm:$0xff]
    %v54 = vld [vmem:[#allocation2 + $0x48] sm:$0xff]
    %v55 = vld [vmem:[#allocation2 + $0x50] sm:$0xff]
    %v56 = vld [vmem:[#allocation2 + $0x58] sm:$0xff]
    %v57 = vld [vmem:[#allocation2 + $0x60] sm:$0xff]
    %v58 = vld [vmem:[#allocation2 + $0x68] sm:$0xff]
    %v59 = vld [vmem:[#allocation2 + $0x70] sm:$0xff]
    %v60 = vld [vmem:[#allocation2 + $0x78] sm:$0xff]
    %61 = vmatpush.msra.mxu0 %v60
    %62 = vmatpush.msra.mxu0 %v59
    %63 = vmatpush.msra.mxu0 %v58
    %64 = vmatpush.msra.mxu0 %v57
    %65 = vmatpush.msra.mxu0 %v56
    %66 = vmatpush.msra.mxu0 %v55
    %67 = vmatpush.msra.mxu0 %v54
    %68 = vmatpush.msra.mxu0 %v53
    %69 = vmatpush.msra.mxu0 %v52
    %70 = vmatpush.msra.mxu0 %v51
    %71 = vmatpush.msra.mxu0 %v50
    %72 = vmatpush.msra.mxu0 %v49
    %73 = vmatpush.msra.mxu0 %v48
    %74 = vmatpush.msra.mxu0 %v47
    %75 = vmatpush.msra.mxu0 %v46
    %76 = vmatpush.msra.mxu0 %v45
    %77 = vmatmul.f32.gmra.mxu0 %v44
    %v78 = vpop.f32.mrf.mxu0
    %v79 = vadd.f32 0.0, %v78
    %80 = vdwg.mxu0
    %v81 = vmul.f32 %v79, 0.03125
    %v82 = vmul.f32 %v44, %v44
    %83 = vmatpush.msra.mxu0 %v60
    %84 = vmatpush.msra.mxu0 %v59
    %85 = vmatpush.msra.mxu0 %v58
    %86 = vmatpush.msra.mxu0 %v57
    %87 = vmatpush.msra.mxu0 %v56
    %88 = vmatpush.msra.mxu0 %v55
    %89 = vmatpush.msra.mxu0 %v54
    %90 = vmatpush.msra.mxu0 %v53
    %91 = vmatpush.msra.mxu0 %v52
    %92 = vmatpush.msra.mxu0 %v51
    %93 = vmatpush.msra.mxu0 %v50
    %94 = vmatpush.msra.mxu0 %v49
    %95 = vmatpush.msra.mxu0 %v48
    %96 = vmatpush.msra.mxu0 %v47
    %97 = vmatpush.msra.mxu0 %v46
    %98 = vmatpush.msra.mxu0 %v45
    %99 = vmatmul.f32.gmra.mxu0 %v82
    %v100 = vpop.f32.mrf.mxu0
    %v101 = vadd.f32 0.0, %v100
    %102 = vdwg.mxu0
    %v103 = vmul.f32 %v101, 0.03125
    %v104 = vmul.f32 %v81, %v81
    %v105 = vsub.f32 %v103, %v104
    %v106 = vmax.f32 %v105, 0.0
    %v107 = vsub.f32 %v44, %v81
    %v108 = vadd.f32 %v106, 1e-05
    %v109 = vrsqrt.pop %v108
    %v110 = vmul.f32 %v109, %v108
    %v111 = vmul.f32 %v110, %v109
    %v112 = vmul.f32 0.5, %v111
    %v113 = vsub.f32 1.5, %v112
    %v114 = vmul.f32 %v109, %v113
    %vm115 = vweird.f32 %v108
    %vm116 = vweird.f32 %v109
    %vm117 = vmor %vm115, %vm116
    %v118 = vsel %vm117, %v109, %v114
    %v119 = vmul.f32 %v107, %v118
    %120 = vst [vmem:[#allocation7] sm:$0xff] %v119
    // Predicated region
    $region18: #{tpu_custom_call.1} parent=1 // pred_check
      _
    $region19: #{tpu_custom_call.1} parent=1 // pred_check_branch
      %122 = sbr.rel (0) target = $region21
    $region20: #{tpu_custom_call.1} parent=1 // pred_region
      %124 = vsyncadd [#allocation4], 64
      %s125 = sshll.u32 [#allocation7], 4
      %s126 = int_to_ptr.vmem [resolvable:$true] %s125
      %s127 = sshll.u32 %s2, 4
      %s128 = int_to_ptr.hbm [resolvable:$true] %s127
      %133 = dma.vmem_to_hbm [thread:$0]  %s126, 64, %s128, [#allocation4], 64, 64, 4
    $region21: #{tpu_custom_call.1} parent=1 // pred_fallthru
      _
    // Predicated region
    $region22: #{tpu_custom_call.1} parent=1 // pred_check
      _
    $region23: #{tpu_custom_call.1} parent=1 // pred_check_branch
      %135 = sbr.rel (0) target = $region25
    $region24: #{tpu_custom_call.1} parent=1 // pred_region
      %137 = dma.done [#allocation4], 128
    $region25: #{tpu_custom_call.1} parent=1 // pred_fallthru
      _
    %138 = vsyncpa [#allocation3], 1
    %139 = vsyncpa [#allocation6], 1
    %140 = vsyncpa [#allocation4], 1

</llo_original>
